<compile_context>
chip_gen: v7x
topology: tpu7x:2x2x1
jax: 0.10.0
libtpu: 0.0.40
codegen_flags: <defaults>
</compile_context>

<pallas_src>
import math
import functools

import jax
import jax.numpy as jnp
from jax.experimental import pallas as pl
from jax.experimental.pallas import tpu as pltpu


def _moco_neg_kernel(q_ref, mem_ref, neg_ref, *, inv_T, use_softmax):
    # (B, D) x (tk, D), contracting the last dims -> (B, tk); f32 MXU accumulate.
    l_neg = jax.lax.dot_general(
        q_ref[...], mem_ref[...],
        dimension_numbers=(((1,), (1,)), ((), ())),
        preferred_element_type=jnp.float32)
    l_neg = l_neg * inv_T
    neg_ref[...] = l_neg if use_softmax else jnp.exp(l_neg)


def _pick_queue_tile(K, D, itemsize=2, budget_bytes=8 << 20):
    """Largest tk that (a) divides K, (b) is a multiple of 128 (lane-dense
    output, sublane-aligned stream), (c) keeps the double-buffered streamed
    tile (2 * tk * D * itemsize) within the VMEM budget.  Falls back to a
    single full-extent tile (tk = K) if no such divisor exists."""
    max_rows = max(128, budget_bytes // (2 * D * itemsize))
    tk = (min(max_rows, K) // 128) * 128
    while tk >= 128:
        if K % tk == 0:
            return tk
        tk -= 128
    return K  # single tile; full-extent block is always legal


@functools.partial(jax.jit, static_argnames=("T", "use_softmax"))
def moco_neg_logits(q, memory, *, T, use_softmax):
    """neg:(B, K) f32; values are logit/T (use_softmax=True) or exp(logit/T)."""
    B, D = q.shape
    K, _ = memory.shape
    tk = _pick_queue_tile(K, D, itemsize=memory.dtype.itemsize)

    kernel = functools.partial(
        _moco_neg_kernel, inv_T=float(1.0 / T), use_softmax=use_softmax)
    neg = pl.pallas_call(
        kernel,
        out_shape=jax.ShapeDtypeStruct((B, K), jnp.float32),
        grid_spec=pltpu.PrefetchScalarGridSpec(
            num_scalar_prefetch=0,
            grid=(K // tk,),
            in_specs=[
                pl.BlockSpec((B, D), lambda j: (0, 0)),    # q: resident in VMEM
                pl.BlockSpec((tk, D), lambda j: (j, 0)),   # bf16 queue tile (streamed)
            ],
            out_specs=pl.BlockSpec((B, tk), lambda j: (0, j)),
        ),
        compiler_params=pltpu.CompilerParams(
            dimension_semantics=("parallel",)),            # shards K-tiles on v7x
    )(q, memory)
    return neg


class MemoryMoCoPallas:
    """Functional re-implementation of utils/NCA_MC.py:MemoryMoCo (forward pass)."""

    def __init__(self, inputSize, outputSize, K, T=0.07, use_softmax=False, seed=0):
        self.inputSize = inputSize
        self.outputSize = outputSize
        self.queueSize = K
        self.T = T
        self.use_softmax = use_softmax
        self.index = 0
        self.Z = -1.0  # 'params' buffer; -1 means "not yet set"
        stdv = 1.0 / math.sqrt(inputSize / 3)
        key = jax.random.PRNGKey(seed)
        # torch.rand(K, D).mul_(2*stdv).add_(-stdv)  -> uniform(-stdv, stdv)
        # Queue kept in bf16: HBM bandwidth on (K, D) is the binding resource.
        self.memory = jax.random.uniform(
            key, (K, inputSize), dtype=jnp.float32,
            minval=-stdv, maxval=stdv).astype(jnp.bfloat16)

    def forward(self, q, k):
        batchSize = q.shape[0]
        k = jax.lax.stop_gradient(k)

        # positive logit: per-row dot q.k — trivial B*D work, XLA fuses it (f32).
        l_pos = jnp.sum(q.astype(jnp.float32) * k.astype(jnp.float32),
                        axis=1, keepdims=True) / self.T

        # negative logits streamed from the bf16 queue via the Pallas kernel.
        neg = moco_neg_logits(q.astype(jnp.bfloat16), self.memory,
                              T=self.T, use_softmax=self.use_softmax)

        if self.use_softmax:
            out = jnp.concatenate((l_pos, neg), axis=1)
            out = jnp.squeeze(out)
        else:
            pos = jnp.exp(l_pos)                      # neg already exp'd in-kernel
            out = jnp.concatenate((pos, neg), axis=1)
            if self.Z < 0:
                # TODO(synk): matches torch .item() — one-time host sync to fix Z
                self.Z = float(jnp.mean(out) * self.outputSize)
            out = jnp.squeeze(out / self.Z)

        # queue update (memory.index_copy_) — pure indexing glue, kept in JAX
        out_ids = (jnp.arange(batchSize) + self.index) % self.queueSize
        self.memory = self.memory.at[out_ids].set(k.astype(jnp.bfloat16))
        self.index = (self.index + batchSize) % self.queueSize
        return out


if __name__ == "__main__":
    inputSize = 128    # feature dim D
    outputSize = 2048  # nLem (dataset size) — only used for Z
    K = 256            # queue size
    B = 8              # batch size

    moco = MemoryMoCoPallas(inputSize, outputSize, K, T=0.07, use_softmax=False)
    mem0 = moco.memory  # snapshot of the bf16 queue before the in-forward update

    key = jax.random.PRNGKey(0)
    kq, kk = jax.random.split(key)
    q = jax.random.normal(kq, (B, inputSize), dtype=jnp.float32)
    k = jax.random.normal(kk, (B, inputSize), dtype=jnp.float32)
    # MoCo embeddings are L2-normalized; also keeps exp(logit/T) finite in f32.
    q = q / jnp.linalg.norm(q, axis=1, keepdims=True)
    k = k / jnp.linalg.norm(k, axis=1, keepdims=True)

    out = moco.forward(q, k)
    jax.block_until_ready(out)
    jax.block_until_ready(moco.memory)

    # pure-JAX reference using the same bf16 queue snapshot (f32 accumulation)
    l_pos_ref = jnp.sum(q * k, axis=1, keepdims=True)
    l_neg_ref = jax.lax.dot_general(
        q.astype(jnp.bfloat16), mem0,
        dimension_numbers=(((1,), (1,)), ((), ())),
        preferred_element_type=jnp.float32)
    ref = jnp.exp(jnp.concatenate((l_pos_ref, l_neg_ref), axis=1) / 0.07)
    ref = ref / (jnp.mean(ref) * outputSize)

    assert out.shape == (B, 1 + K), f"bad shape {out.shape}"
    assert jnp.allclose(out, ref, rtol=2e-2, atol=1e-6), "mismatch vs reference"
    # queue update check (first B rows replaced by k)
    assert jnp.allclose(moco.memory[:B], k.astype(jnp.bfloat16)), "queue update wrong"

    # also exercise the use_softmax=True path once
    moco_sm = MemoryMoCoPallas(inputSize, outputSize, K, T=0.07, use_softmax=True)
    mem0_sm = moco_sm.memory
    out_sm = moco_sm.forward(q, k)
    jax.block_until_ready(out_sm)
    ref_sm = jnp.concatenate(
        (l_pos_ref,
         jax.lax.dot_general(q.astype(jnp.bfloat16), mem0_sm,
                             dimension_numbers=(((1,), (1,)), ((), ())),
                             preferred_element_type=jnp.float32)),
        axis=1) / 0.07
    assert out_sm.shape == (B, 1 + K), f"bad shape {out_sm.shape}"
    assert jnp.allclose(out_sm, ref_sm, rtol=2e-2, atol=1e-4), "softmax path mismatch"

    print("KERNEL_OK")
</pallas_src>

<mosaic_0001>
module attributes {stable_mosaic.version = 11 : i64} {
  func.func @_moco_neg_kernel(%arg0: i32, %arg1: memref<8x128xbf16, #tpu.memory_space<vmem>>, %arg2: memref<256x128xbf16, #tpu.memory_space<vmem>>, %arg3: memref<8x256xf32, #tpu.memory_space<vmem>>) attributes {dimension_semantics = [#tpu.dimension_semantics<parallel>], iteration_bounds = array<i64: 1>, scalar_prefetch = 0 : i64, scratch_operands = 0 : i64, tpu.core_type = #tpu.core_type<tc>, window_params = [{pipeline_mode = #tpu.pipeline_mode<synchronous>, transform_indices = @transform_0, window_bounds = array<i64: 8, 128>}, {transform_indices = @transform_1, window_bounds = array<i64: 256, 128>}, {transform_indices = @transform_2, window_bounds = array<i64: 8, 256>}]} {
    %c0 = arith.constant 0 : index
    %c0_0 = arith.constant 0 : index
    %0 = vector.load %arg1[%c0, %c0_0] : memref<8x128xbf16, #tpu.memory_space<vmem>>, vector<8x128xbf16>
    %c0_1 = arith.constant 0 : index
    %c0_2 = arith.constant 0 : index
    %1 = vector.load %arg2[%c0_1, %c0_2] : memref<256x128xbf16, #tpu.memory_space<vmem>>, vector<256x128xbf16>
    %cst = arith.constant dense<0.000000e+00> : vector<8x256xf32>
    %2 = tpu.matmul %0, %1, %cst {dimension_numbers = #tpu.dot_dimension_numbers<[1], [1], [0], [0], [0, 0, 1, 0], [], []>} : vector<8x128xbf16>, vector<256x128xbf16>, vector<8x256xf32> -> vector<8x256xf32>
    %cst_3 = arith.constant 14.2857141 : f32
    %3 = vector.broadcast %cst_3 : f32 to vector<8x256xf32>
    %4 = arith.mulf %2, %3 : vector<8x256xf32>
    %5 = math.exp %4 : vector<8x256xf32>
    %c0_4 = arith.constant 0 : index
    %c0_5 = arith.constant 0 : index
    %6 = vector.load %arg3[%c0_4, %c0_5] : memref<8x256xf32, #tpu.memory_space<vmem>>, vector<8x256xf32>
    tpu.vector_store %arg3[%c0_4, %c0_5], %5 {strides = array<i32>} : memref<8x256xf32, #tpu.memory_space<vmem>>, vector<8x256xf32>,
    return
  }
  func.func @transform_0(%arg0: i32) -> (i32, i32) {
    %c0_i32 = arith.constant 0 : i32
    %c0_i32_0 = arith.constant 0 : i32
    %c0_i32_1 = arith.constant 0 : i32
    return %c0_i32, %c0_i32_0 : i32, i32
  }
  func.func @transform_1(%arg0: i32) -> (i32, i32) {
    %c0_i32 = arith.constant 0 : i32
    %c0_i32_0 = arith.constant 0 : i32
    return %arg0, %c0_i32 : i32, i32
  }
  func.func @transform_2(%arg0: i32) -> (i32, i32) {
    %c0_i32 = arith.constant 0 : i32
    %c0_i32_0 = arith.constant 0 : i32
    return %c0_i32, %arg0 : i32, i32
  }
}

</mosaic_0001>

<llo_original>
// kernel: moco_neg_logits.1
$region0: #{moco_neg_logits.1}
  #allocation0 [shape = 'u32[]', space=smem, size = 0x4, offset = 0x4, fixed_abs, tag = 'smem constant byte address 0x4 - core index']
  #allocation1 [shape = 'u32[144,128]{1,0:T(1,128)}', space=vmem, size = 0x12000, scoped, tag = 'internal scratch']
  %s0 = inlined_call_operand.hbm [shape: bf16[8,128], index: 0, kind: input, shape index: {}]
  %s1 = inlined_call_operand.hbm [shape: bf16[256,128], index: 1, kind: input, shape index: {}]
  %s2 = inlined_call_operand.hbm [shape: f32[8,256], index: 2, kind: output, shape index: {}]
  %s3 = sld [smem:[#allocation0]]
  $region26: #{moco_neg_logits.1} parent=0
    _
  %s5 = ssub.s32 1, %s3
  %s6 = scalar_select 0, %s5, %s3
  $region1: #{moco_neg_logits.1} parent=0
    #allocation2 [shape = 'u8[2048]{0}', space=vmem, size = 0x800, scoped, tag = 'input window, operand 0, single buffered']
    #allocation3 [shape = 's32[1]{0}', space=sflag, size = 0x4, scoped, tag = 'scoped memory for moco_neg_logits.1']
    #allocation4 [shape = 's32[1]{0}', space=sflag, size = 0x4, scoped, tag = 'scoped memory for moco_neg_logits.1']
    #allocation5 [shape = 'u8[65536]{0}', space=vmem, size = 0x10000, scoped, tag = 'input window, operand 1, single buffered']
    #allocation6 [shape = 's32[1]{0}', space=sflag, size = 0x4, scoped, tag = 'scoped memory for moco_neg_logits.1']
    #allocation7 [shape = 'u8[8192]{0}', space=vmem, size = 0x2000, scoped, tag = 'output window, operand 0, single buffered']
    %7 = vsyncpa [#allocation3], 0
    %8 = vsyncpa [#allocation6], 0
    %9 = vsyncpa [#allocation4], 0
    // Predicated region
    $region2: #{moco_neg_logits.1} parent=1 // pred_check
      _
    $region3: #{moco_neg_logits.1} parent=1 // pred_check_branch
      %11 = sbr.rel (0) target = $region5
    $region4: #{moco_neg_logits.1} parent=1 // pred_region
      %s13 = ssub.s32 64, 64
      %14 = vsyncadd [#allocation3], %s13
      %s16 = sshll.u32 [#allocation2], 4
      %s17 = int_to_ptr.vmem [resolvable:$true] %s16
      %19 = dma.hbm_to_vmem [thread:$0]  %s0, 64, %s17, [#allocation3]
    $region5: #{moco_neg_logits.1} parent=1 // pred_fallthru
      _
    // Predicated region
    $region6: #{moco_neg_logits.1} parent=1 // pred_check
      _
    $region7: #{moco_neg_logits.1} parent=1 // pred_check_branch
      %21 = sbr.rel (0) target = $region9
    $region8: #{moco_neg_logits.1} parent=1 // pred_region
      %s23 = ssub.s32 2048, 2048
      %24 = vsyncadd [#allocation6], %s23
      %s25 = sshll.u32 [#allocation5], 4
      %s26 = int_to_ptr.vmem [resolvable:$true] %s25
      %31 = dma.hbm_to_vmem [thread:$0]  %s1, 2048, %s26, [#allocation6], 64, 64, 4
    $region9: #{moco_neg_logits.1} parent=1 // pred_fallthru
      _
    // Predicated region
    $region10: #{moco_neg_logits.1} parent=1 // pred_check
      _
    $region11: #{moco_neg_logits.1} parent=1 // pred_check_branch
      %33 = sbr.rel (0) target = $region13
    $region12: #{moco_neg_logits.1} parent=1 // pred_region
      %34 = dma.done [#allocation3], 64
    $region13: #{moco_neg_logits.1} parent=1 // pred_fallthru
      _
    // Predicated region
    $region14: #{moco_neg_logits.1} parent=1 // pred_check
      _
    $region15: #{moco_neg_logits.1} parent=1 // pred_check_branch
      %36 = sbr.rel (0) target = $region17
    $region16: #{moco_neg_logits.1} parent=1 // pred_region
      %37 = dma.done [#allocation6], 2048
    $region17: #{moco_neg_logits.1} parent=1 // pred_fallthru
      _
    %v39 = vld [vmem:[#allocation2] sm:$0xf]
    %v40 = vld [vmem:[#allocation5] sm:$0xf]
    %v41 = vld [vmem:[#allocation5 + $0x4] sm:$0xf]
    %v42 = vld [vmem:[#allocation5 + $0x8] sm:$0xf]
    %v43 = vld [vmem:[#allocation5 + $0xc] sm:$0xf]
    %v44 = vld [vmem:[#allocation5 + $0x10] sm:$0xf]
    %v45 = vld [vmem:[#allocation5 + $0x14] sm:$0xf]
    %v46 = vld [vmem:[#allocation5 + $0x18] sm:$0xf]
    %v47 = vld [vmem:[#allocation5 + $0x1c] sm:$0xf]
    %v48 = vld [vmem:[#allocation5 + $0x20] sm:$0xf]
    %v49 = vld [vmem:[#allocation5 + $0x24] sm:$0xf]
    %v50 = vld [vmem:[#allocation5 + $0x28] sm:$0xf]
    %v51 = vld [vmem:[#allocation5 + $0x2c] sm:$0xf]
    %v52 = vld [vmem:[#allocation5 + $0x30] sm:$0xf]
    %v53 = vld [vmem:[#allocation5 + $0x34] sm:$0xf]
    %v54 = vld [vmem:[#allocation5 + $0x38] sm:$0xf]
    %v55 = vld [vmem:[#allocation5 + $0x3c] sm:$0xf]
    %v56 = vld [vmem:[#allocation5 + $0x40] sm:$0xf]
    %v57 = vld [vmem:[#allocation5 + $0x44] sm:$0xf]
    %v58 = vld [vmem:[#allocation5 + $0x48] sm:$0xf]
    %v59 = vld [vmem:[#allocation5 + $0x4c] sm:$0xf]
    %v60 = vld [vmem:[#allocation5 + $0x50] sm:$0xf]
    %v61 = vld [vmem:[#allocation5 + $0x54] sm:$0xf]
    %v62 = vld [vmem:[#allocation5 + $0x58] sm:$0xf]
    %v63 = vld [vmem:[#allocation5 + $0x5c] sm:$0xf]
    %v64 = vld [vmem:[#allocation5 + $0x60] sm:$0xf]
    %v65 = vld [vmem:[#allocation5 + $0x64] sm:$0xf]
    %v66 = vld [vmem:[#allocation5 + $0x68] sm:$0xf]
    %v67 = vld [vmem:[#allocation5 + $0x6c] sm:$0xf]
    %v68 = vld [vmem:[#allocation5 + $0x70] sm:$0xf]
    %v69 = vld [vmem:[#allocation5 + $0x74] sm:$0xf]
    %v70 = vld [vmem:[#allocation5 + $0x78] sm:$0xf]
    %v71 = vld [vmem:[#allocation5 + $0x7c] sm:$0xf]
    %v104 = vunpack.c.l.b16 %v40
    %v105 = vunpack.c.l.b16 %v41
    %v106 = vunpack.c.l.b16 %v42
    %v107 = vunpack.c.l.b16 %v43
    %v108 = vunpack.c.l.b16 %v44
    %v109 = vunpack.c.l.b16 %v45
    %v110 = vunpack.c.l.b16 %v46
    %v111 = vunpack.c.l.b16 %v47
    %v112 = vunpack.c.l.b16 %v48
    %v113 = vunpack.c.l.b16 %v49
    %v114 = vunpack.c.l.b16 %v50
    %v115 = vunpack.c.l.b16 %v51
    %v116 = vunpack.c.l.b16 %v52
    %v117 = vunpack.c.l.b16 %v53
    %v118 = vunpack.c.l.b16 %v54
    %v119 = vunpack.c.l.b16 %v55
    %v120 = vunpack.c.l.b16 %v56
    %v121 = vunpack.c.l.b16 %v57
    %v122 = vunpack.c.l.b16 %v58
    %v123 = vunpack.c.l.b16 %v59
    %v124 = vunpack.c.l.b16 %v60
    %v125 = vunpack.c.l.b16 %v61
    %v126 = vunpack.c.l.b16 %v62
    %v127 = vunpack.c.l.b16 %v63
    %v128 = vunpack.c.l.b16 %v64
    %v129 = vunpack.c.l.b16 %v65
    %v130 = vunpack.c.l.b16 %v66
    %v131 = vunpack.c.l.b16 %v67
    %v132 = vunpack.c.l.b16 %v68
    %v133 = vunpack.c.l.b16 %v69
    %v134 = vunpack.c.l.b16 %v70
    %v135 = vunpack.c.l.b16 %v71
    %v136 = vpack.c.b16 %v105, %v104
    %v137 = vpack.c.b16 %v107, %v106
    %v138 = vpack.c.b16 %v109, %v108
    %v139 = vpack.c.b16 %v111, %v110
    %v140 = vpack.c.b16 %v113, %v112
    %v141 = vpack.c.b16 %v115, %v114
    %v142 = vpack.c.b16 %v117, %v116
    %v143 = vpack.c.b16 %v119, %v118
    %v144 = vpack.c.b16 %v121, %v120
    %v145 = vpack.c.b16 %v123, %v122
    %v146 = vpack.c.b16 %v125, %v124
    %v147 = vpack.c.b16 %v127, %v126
    %v148 = vpack.c.b16 %v129, %v128
    %v149 = vpack.c.b16 %v131, %v130
    %v150 = vpack.c.b16 %v133, %v132
    %v151 = vpack.c.b16 %v135, %v134
    %168 = vmatprep.subr.bf16.mxu0 0
    %169 = vmatpush1.bf16.xpose.msra.mxu0 %v136
    %170 = vmatprep.subr.bf16.mxu0 0
    %171 = vmatpush1.bf16.xpose.msra.mxu0 %v137
    %172 = vmatprep.subr.bf16.mxu0 0
    %173 = vmatpush1.bf16.xpose.msra.mxu0 %v138
    %174 = vmatprep.subr.bf16.mxu0 0
    %175 = vmatpush1.bf16.xpose.msra.mxu0 %v139
    %176 = vmatprep.subr.bf16.mxu0 0
    %177 = vmatpush1.bf16.xpose.msra.mxu0 %v140
    %178 = vmatprep.subr.bf16.mxu0 0
    %179 = vmatpush1.bf16.xpose.msra.mxu0 %v141
    %180 = vmatprep.subr.bf16.mxu0 0
    %181 = vmatpush1.bf16.xpose.msra.mxu0 %v142
    %182 = vmatprep.subr.bf16.mxu0 0
    %183 = vmatpush1.bf16.xpose.msra.mxu0 %v143
    %184 = vmatprep.subr.bf16.mxu0 0
    %185 = vmatpush1.bf16.xpose.msra.mxu0 %v144
    %186 = vmatprep.subr.bf16.mxu0 0
    %187 = vmatpush1.bf16.xpose.msra.mxu0 %v145
    %188 = vmatprep.subr.bf16.mxu0 0
    %189 = vmatpush1.bf16.xpose.msra.mxu0 %v146
    %190 = vmatprep.subr.bf16.mxu0 0
    %191 = vmatpush1.bf16.xpose.msra.mxu0 %v147
    %192 = vmatprep.subr.bf16.mxu0 0
    %193 = vmatpush1.bf16.xpose.msra.mxu0 %v148
    %194 = vmatprep.subr.bf16.mxu0 0
    %195 = vmatpush1.bf16.xpose.msra.mxu0 %v149
    %196 = vmatprep.subr.bf16.mxu0 0
    %197 = vmatpush1.bf16.xpose.msra.mxu0 %v150
    %198 = vmatprep.subr.bf16.mxu0 0
    %199 = vmatpush1.bf16.xpose.msra.mxu0 %v151
    %200 = vmatprep.mubr.bf16.mxu0 0
    %201 = vmatmul.mubr.bf16.gmra.mrb[0].mxu0 %v39
    %v202 = vpop.f32.mrb[0].mxu0
    %v203 = vadd.f32 0.0, %v202
    %v204 = vpop.f32.mrb[0].mxu0
    %v205 = vadd.f32 0.0, %v204
    %v206 = vpop.f32.mrb[0].mxu0
    %v207 = vpop.f32.mrb[0].mxu0
    %208 = vdwg.mxu0
    %v209 = vmul.f32 %v203, 14.285714
    %v210 = vmul.f32 %v205, 14.285714
    %v211 = vmul.f32 %v209, 1.442695
    %v212 = vpow.pop %v211
    %v213 = vmul.f32 %v210, 1.442695
    %v214 = vpow.pop %v213
    %215 = vst [vmem:[#allocation7] sm:$0xff] %v212
    %216 = vst [vmem:[#allocation7 + $0x8] sm:$0xff] %v214
    // Predicated region
    $region18: #{moco_neg_logits.1} parent=1 // pred_check
      _
    $region19: #{moco_neg_logits.1} parent=1 // pred_check_branch
      %218 = sbr.rel (0) target = $region21
    $region20: #{moco_neg_logits.1} parent=1 // pred_region
      %s220 = ssub.s32 256, 256
      %221 = vsyncadd [#allocation4], %s220
      %s223 = sshll.u32 [#allocation7], 4
      %s224 = int_to_ptr.vmem [resolvable:$true] %s223
      %226 = dma.vmem_to_hbm [thread:$0]  %s224, 256, %s2, [#allocation4]
    $region21: #{moco_neg_logits.1} parent=1 // pred_fallthru
      _
    // Predicated region
    $region22: #{moco_neg_logits.1} parent=1 // pred_check
      _
    $region23: #{moco_neg_logits.1} parent=1 // pred_check_branch
      %228 = sbr.rel (0) target = $region25
    $region24: #{moco_neg_logits.1} parent=1 // pred_region
      %229 = dma.done [#allocation4], 256
    $region25: #{moco_neg_logits.1} parent=1 // pred_fallthru
      _
    %230 = vsyncpa [#allocation3], 1
    %231 = vsyncpa [#allocation6], 1
    %232 = vsyncpa [#allocation4], 1

</llo_original>
